<compile_context>
chip_gen: v7x
topology: tpu7x:2x2x1
jax: 0.10.0
libtpu: 0.0.40
codegen_flags: <defaults>
</compile_context>

<pallas_src>
from math import factorial

import numpy as np
import jax
import jax.numpy as jnp
from jax.experimental import pallas as pl
from jax.experimental.pallas import tpu as pltpu


# --------------------------------------------------------------------------- #
# Parameter setup glue (plain numpy, deterministic)                            #
# --------------------------------------------------------------------------- #

# TODO(synk): DELIMIT's sph2cart/cart2sph helpers are not shown in the module;
# we use the polar-from-+z convention so the base kernel is centered on the
# z-axis before being quaternion-rotated onto each sampled gradient.
def _sph2cart(azimuth, polar, r):
    x = r * np.sin(polar) * np.cos(azimuth)
    y = r * np.sin(polar) * np.sin(azimuth)
    z = r * np.cos(polar)
    return x, y, z


def _assoc_legendre(l, m, x):
    """P_l^m(x), m >= 0, Condon-Shortley phase (matches scipy.special.lpmv)."""
    x = np.asarray(x, dtype=np.float64)
    pmm = np.ones_like(x)
    if m > 0:
        somx2 = np.sqrt(np.maximum(0.0, (1.0 - x) * (1.0 + x)))
        fact = 1.0
        for _ in range(m):
            pmm = -pmm * fact * somx2
            fact += 2.0
    if l == m:
        return pmm
    pmmp1 = x * (2 * m + 1) * pmm
    if l == m + 1:
        return pmmp1
    for ll in range(m + 2, l + 1):
        pll = ((2 * ll - 1) * x * pmmp1 - (ll + m - 1) * pmm) / (ll - m)
        pmm, pmmp1 = pmmp1, pll
    return pmmp1


def _real_sh_basis(sh_order, gradients):
    """Real, symmetric (even order) SH basis: rows = gradients, cols = coefficients.

    Matches DELIMIT: Y = sph_harm(|m|, l, azimuth, polar);
      m<0 -> sqrt(2)*Re(Y),  m=0 -> Re(Y),  m>0 -> sqrt(2)*Im(Y).
    """
    g = np.asarray(gradients, dtype=np.float64)
    n = g.shape[0]
    ncoef = int((sh_order + 1) * (sh_order / 2 + 1))
    az = np.arctan2(g[:, 1], g[:, 0])
    rad = np.linalg.norm(g, axis=1)
    polar = np.arccos(np.clip(g[:, 2] / np.maximum(rad, 1e-12), -1.0, 1.0))
    B = np.zeros((n, ncoef), dtype=np.float64)
    col = 0
    for l in range(0, sh_order + 1, 2):
        for m in range(-l, l + 1):
            am = abs(m)
            norm = np.sqrt((2 * l + 1) / (4 * np.pi)
                           * factorial(l - am) / factorial(l + am))
            P = _assoc_legendre(l, am, np.cos(polar))
            if m < 0:
                B[:, col] = np.sqrt(2.0) * norm * P * np.cos(am * az)   # Re(Y)*sqrt(2)
            elif m == 0:
                B[:, col] = norm * P                                    # Re(Y)
            else:
                B[:, col] = np.sqrt(2.0) * norm * P * np.sin(m * az)    # Im(Y)*sqrt(2)
            col += 1
    return B


def _lb_regularizer(sh_order, lb_lambda):
    d = []
    for l in range(0, sh_order + 1, 2):
        for _ in range(-l, l + 1):
            d.append(lb_lambda * l ** 2 * (l + 1) ** 2)
    return np.diag(np.asarray(d, dtype=np.float64))


def _rotate_axis_angle(axis, angle, v):
    """Right-handed rotation of v by `angle` about `axis` (Rodrigues), like pyquaternion."""
    n = axis / np.linalg.norm(axis)
    c, s = np.cos(angle), np.sin(angle)
    return v * c + np.cross(n, v) * s + n * np.dot(n, v) * (1.0 - c)


def _fibonacci_sphere(n):
    i = np.arange(n, dtype=np.float64)
    z = 1.0 - (2.0 * i + 1.0) / n
    r = np.sqrt(np.maximum(0.0, 1.0 - z * z))
    th = np.pi * (3.0 - np.sqrt(5.0)) * i
    return np.stack([r * np.cos(th), r * np.sin(th), z], axis=1)


def build_local_spherical_conv_params(shells_in, shells_out, sh_order_in, sh_order_out,
                                      sampled_gradients, kernel_sizes,
                                      lb_lambda=0.006, angular_distance=np.pi / 8,
                                      seed=0):
    coeff_in = int((sh_order_in + 1) * (sh_order_in / 2 + 1))
    coeff_out = int((sh_order_out + 1) * (sh_order_out / 2 + 1))
    num_gradients = sampled_gradients.shape[0]
    kernel_sum = int(np.sum(kernel_sizes) + 1)

    # --- base kernel (one center + rings of kernel_sizes samples), as in __init__ ---
    base_kernel = np.zeros((kernel_sum, 3), dtype=np.float64)
    base_kernel[:, 2] = 1.0                       # r = 1
    gid = 1
    for id_layer, num_samples in enumerate(kernel_sizes):
        base_kernel[gid:gid + num_samples, 0] = (
            np.arange(-np.pi, np.pi, 2 * np.pi / num_samples) + (id_layer % 2) * np.pi)
        base_kernel[gid:gid + num_samples, 1] = angular_distance * (id_layer + 1)
        gid += num_samples
    bx, by, bz = _sph2cart(base_kernel[:, 0], base_kernel[:, 1], base_kernel[:, 2])
    base_kernel = np.stack([bx, by, bz], axis=1)

    # --- rotate base kernel onto every sampled gradient (quaternion -> Rodrigues) ---
    # NOTE: angle = arccos(z.g) * sign(z.g) mirrors the original DELIMIT code exactly
    # (reference-faithful), including its handling of lower-hemisphere gradients.
    rot_angle = np.matmul(np.array([0.0, 0.0, 1.0]), sampled_gradients.T)
    rot_angle = np.arccos(np.clip(rot_angle, -1.0, 1.0)) * np.sign(rot_angle)
    rot_axis = np.cross(sampled_gradients, np.array([0.0, 0.0, 1.0]))
    # guard degenerate case: gradient exactly +/- z -> zero-norm axis.  Angle is then
    # 0 or +/-pi, so any axis perpendicular to z gives the correct rotation.
    deg = np.linalg.norm(rot_axis, axis=1) < 1e-8
    rot_axis[deg] = np.array([1.0, 0.0, 0.0])
    conv_gradients = np.zeros((num_gradients * kernel_sum, 3), dtype=np.float64)
    for ig in range(num_gradients):
        for ik in range(kernel_sum):
            conv_gradients[ig * kernel_sum + ik, :] = _rotate_axis_angle(
                rot_axis[ig], rot_angle[ig], base_kernel[ik])

    # --- SH2Signal matrix (sh_order_in, conv_gradients):  (coeff_in, G*K) ---
    # column index = g*K + k  (g-major / k-minor, the ordering conv_gradients was built in)
    m1 = _real_sh_basis(sh_order_in, conv_gradients).T            # (coeff_in, G*K)

    # --- Signal2SH matrix (sh_order_out, sampled_gradients, lb_lambda): (G, coeff_out) ---
    b2 = _real_sh_basis(sh_order_out, sampled_gradients)           # (G, coeff_out)
    l2 = _lb_regularizer(sh_order_out, lb_lambda)
    m2 = np.matmul(np.linalg.inv(b2.T @ b2 + l2), b2.T).T          # (G, coeff_out)

    # --- Conv2d(shells_in, shells_out, kernel_size=(1, kernel_sum), bias=True) params ---
    kw, kb = jax.random.split(jax.random.PRNGKey(seed + 1))
    fan_in = shells_in * kernel_sum
    bound = 1.0 / np.sqrt(fan_in)
    weight = jax.random.uniform(kw, (shells_out, shells_in, kernel_sum),
                                jnp.float32, -bound, bound)
    bias = jax.random.uniform(kb, (shells_out,), jnp.float32, -bound, bound)

    cfg = dict(shells_in=shells_in, shells_out=shells_out,
               coeff_in=coeff_in, coeff_out=coeff_out,
               num_gradients=num_gradients, kernel_sum=kernel_sum)
    params = dict(
        m1=jnp.asarray(m1, jnp.float32),       # (C_in, G*K)  SH -> signal (conv gradients)
        m2=jnp.asarray(m2, jnp.float32),       # (G, P)       signal -> SH (sampled gradients)
        weight=weight,                         # (S_o, S_i, K) trainable
        bias=bias,                             # (S_o,)        trainable
    )
    return cfg, params


# --------------------------------------------------------------------------- #
# Fused-affine construction (jnp: stays differentiable w.r.t. weight / bias)   #
# --------------------------------------------------------------------------- #

def fused_affine(cfg, params):
    """Fuse SH2Signal -> Conv2d(1,K) -> Signal2SH into one (C_out, C_in) matrix + bias."""
    S_i, C_in = cfg['shells_in'], cfg['coeff_in']
    S_o, P = cfg['shells_out'], cfg['coeff_out']
    G, K = cfg['num_gradients'], cfg['kernel_sum']
    m1 = params['m1'].reshape(C_in, G, K)               # (C_in, G, K)
    m2 = params['m2']                                   # (G, P)
    w = params['weight']                                # (S_o, S_i, K)
    b = params['bias']                                  # (S_o,)
    # W_T[(so,p),(ci,c)] = sum_{g,k} m1[c,g,k] * w[so,ci,k] * m2[g,p]
    W_T = jnp.einsum('cgk,oik,gp->opic', m1, w, m2).reshape(S_o * P, S_i * C_in)
    # b_sh[(so,p)] = b[so] * sum_g m2[g,p]
    b_col = jnp.einsum('o,gp->op', b, m2).reshape(S_o * P, 1)
    return W_T, b_col


# --------------------------------------------------------------------------- #
# Pallas kernel                                                                #
# --------------------------------------------------------------------------- #

def _fused_kernel(x_ref, w_ref, b_ref, o_ref):
    # x_ref : (1, C_in_total, tile_v)  VMEM   input SH coeffs, voxels on the lane axis
    # w_ref : (C_out_total, C_in_total) VMEM  fused affine matrix (resident)
    # b_ref : (C_out_total, 1)         VMEM   fused bias column (resident, f32)
    # o_ref : (1, C_out_total, tile_v) VMEM   output SH coeffs, voxels on the lane axis
    # Columns (voxels) are independent -> garbage lanes in a ragged final block only
    # produce garbage in the corresponding (masked, dropped) output lanes.
    y = jnp.dot(w_ref[...], x_ref[0], preferred_element_type=jnp.float32)
    o_ref[0] = (y + b_ref[...]).astype(o_ref.dtype)


def _round_up(n, m):
    return ((n + m - 1) // m) * m


def local_spherical_convolution(x, cfg, params, tile_v=8192, out_dtype=jnp.float32):
    """Forward pass.  x: (B, shells_in*coeff_in, X, Y, Z)  (PyTorch NC-DHW layout).

    The activation is consumed in its own dtype (no wrapper astype pass).  For a
    mem-bound kernel, pass x already in bf16 and/or out_dtype=jnp.bfloat16 to cut
    HBM bytes; MXU accumulation stays f32 either way.
    """
    S_i, C_in = cfg['shells_in'], cfg['coeff_in']
    S_o, P = cfg['shells_out'], cfg['coeff_out']
    C_tot = S_i * C_in
    C_out = S_o * P

    Bn, C, X, Y, Z = x.shape
    assert C == C_tot
    V = X * Y * Z

    W_T, b_col = fused_affine(cfg, params)
    W_T = W_T.astype(x.dtype)                 # tiny constant; match activation dtype
    b_col = b_col.astype(jnp.float32)

    # Native channel-major layout, voxels on the lane axis.  Free metadata reshape:
    # NO pad, NO dtype cast, NO transpose -> no extra HBM passes.
    x_r = x.reshape(Bn, C_tot, V)

    # ---- lane-tile selection -------------------------------------------------
    vp128 = _round_up(V, 128)                     # smallest legal lane tile cover
    tile = min(_round_up(int(tile_v), 128), vp128)
    tile = max(tile, min(512, vp128))             # never drop below 512 lanes (roofline)
    if Bn == 1 and V >= 1024 and pl.cdiv(V, tile) < 2:
        # give v7x's second TensorCore at least one voxel tile to work on
        tile = max(512, _round_up(pl.cdiv(V, 2), 128))
    n_vt = pl.cdiv(V, tile)                       # ragged final block is allowed

    # ---- cost estimate (advisory; kernel is HBM-bound on every generation) ---
    in_bytes = Bn * V * C_tot * x_r.dtype.itemsize
    out_bytes = Bn * V * C_out * np.dtype(out_dtype).itemsize
    const_bytes = W_T.size * np.dtype(W_T.dtype).itemsize + b_col.size * 4
    cost = pl.CostEstimate(
        flops=2 * Bn * V * C_out * C_tot + Bn * V * C_out,
        transcendentals=0,
        bytes_accessed=in_bytes + out_bytes + const_bytes)

    out = pl.pallas_call(
        _fused_kernel,
        out_shape=jax.ShapeDtypeStruct((Bn, C_out, V), out_dtype),
        grid=(Bn, n_vt),
        in_specs=[
            pl.BlockSpec((1, C_tot, tile), lambda b, i: (b, 0, i)),
            pl.BlockSpec((C_out, C_tot), lambda b, i: (0, 0)),   # resident constants
            pl.BlockSpec((C_out, 1), lambda b, i: (0, 0)),
        ],
        out_specs=pl.BlockSpec((1, C_out, tile), lambda b, i: (b, 0, i)),
        compiler_params=pltpu.CompilerParams(
            dimension_semantics=("parallel", "parallel")),
        cost_estimate=cost,
    )(x_r, W_T, b_col)

    return out.reshape(Bn, C_out, X, Y, Z)


# --------------------------------------------------------------------------- #
# Pure numpy reference (mirrors the PyTorch forward op-for-op, unfused)        #
# --------------------------------------------------------------------------- #

def reference_forward(x, cfg, params):
    S_i, C_in = cfg['shells_in'], cfg['coeff_in']
    S_o, P = cfg['shells_out'], cfg['coeff_out']
    G, K = cfg['num_gradients'], cfg['kernel_sum']
    m1 = np.asarray(params['m1'], np.float64)          # (C_in, G*K), g-major/k-minor
    m2 = np.asarray(params['m2'], np.float64)          # (G, P)
    W = np.asarray(params['weight'], np.float64)       # (S_o, S_i, K)
    b = np.asarray(params['bias'], np.float64)         # (S_o,)

    x = np.asarray(x, np.float64)
    Bn, C, X, Y, Z = x.shape
    xv = x.reshape(Bn, C, X * Y * Z).transpose(0, 2, 1).reshape(-1, S_i, C_in)   # (N, S_i, C_in)
    sig = np.einsum('nic,cm->nim', xv, m1).reshape(-1, S_i, G, K)                # SH2Signal
    conv = np.einsum('nigk,oik->nog', sig, W) + b[None, :, None]                 # Conv2d (1,K)
    sh = np.einsum('nog,gp->nop', conv, m2).reshape(-1, S_o * P)                 # Signal2SH
    out = sh.reshape(Bn, X * Y * Z, S_o * P).transpose(0, 2, 1)
    return out.reshape(Bn, S_o * P, X, Y, Z)


# --------------------------------------------------------------------------- #
# Main                                                                         #
# --------------------------------------------------------------------------- #

if __name__ == "__main__":
    # small configuration consistent with the module
    shells_in, shells_out = 2, 6
    sh_order_in, sh_order_out = 4, 2        # coeff_in = 15, coeff_out = 6
    num_gradients = 8
    kernel_sizes = [4]                      # kernel_sum = 5

    sampled_gradients = _fibonacci_sphere(num_gradients)
    cfg, params = build_local_spherical_conv_params(
        shells_in, shells_out, sh_order_in, sh_order_out,
        sampled_gradients, kernel_sizes, lb_lambda=0.006,
        angular_distance=np.pi / 8, seed=0)

    key = jax.random.PRNGKey(0)
    k1, k2 = jax.random.split(key)

    # --- test 1: lane-aligned volume (B=2, 8x8x8 -> 512 voxels, single full tile) ---
    B, X, Y, Z = 2, 8, 8, 8
    x = jax.random.normal(k1, (B, shells_in * cfg['coeff_in'], X, Y, Z), jnp.float32)
    out = jax.block_until_ready(local_spherical_convolution(x, cfg, params))
    expected_shape = (B, shells_out * cfg['coeff_out'], X, Y, Z)
    assert out.shape == expected_shape, (out.shape, expected_shape)
    ref = reference_forward(np.asarray(x), cfg, params)
    np.testing.assert_allclose(np.asarray(out), ref, rtol=2e-3, atol=2e-3)

    # --- test 2: ragged volume (B=1, 12x11x10 -> 1320 voxels, multi-tile + masked tail) ---
    B2, X2, Y2, Z2 = 1, 12, 11, 10
    x2 = jax.random.normal(k2, (B2, shells_in * cfg['coeff_in'], X2, Y2, Z2), jnp.float32)
    out2 = jax.block_until_ready(
        local_spherical_convolution(x2, cfg, params, tile_v=512))
    expected_shape2 = (B2, shells_out * cfg['coeff_out'], X2, Y2, Z2)
    assert out2.shape == expected_shape2, (out2.shape, expected_shape2)
    ref2 = reference_forward(np.asarray(x2), cfg, params)
    np.testing.assert_allclose(np.asarray(out2), ref2, rtol=2e-3, atol=2e-3)

    print("KERNEL_OK")
</pallas_src>

<mosaic_0001>
module attributes {stable_mosaic.version = 11 : i64} {
  func.func @_fused_kernel(%arg0: i32, %arg1: i32, %arg2: memref<1x30x512xf32, #tpu.memory_space<vmem>>, %arg3: memref<36x30xf32, #tpu.memory_space<vmem>>, %arg4: memref<36x1xf32, #tpu.memory_space<vmem>>, %arg5: memref<1x36x512xf32, #tpu.memory_space<vmem>>) attributes {dimension_semantics = [#tpu.dimension_semantics<parallel>, #tpu.dimension_semantics<parallel>], iteration_bounds = array<i64: 2, 1>, scalar_prefetch = 0 : i64, scratch_operands = 0 : i64, tpu.core_type = #tpu.core_type<tc>, window_params = [{transform_indices = @transform_0, window_bounds = array<i64: 1, 30, 512>}, {pipeline_mode = #tpu.pipeline_mode<synchronous>, transform_indices = @transform_1, window_bounds = array<i64: 36, 30>}, {pipeline_mode = #tpu.pipeline_mode<synchronous>, transform_indices = @transform_2, window_bounds = array<i64: 36, 1>}, {transform_indices = @transform_3, window_bounds = array<i64: 1, 36, 512>}]} {
    %c0 = arith.constant 0 : index
    %c0_0 = arith.constant 0 : index
    %0 = vector.load %arg3[%c0, %c0_0] : memref<36x30xf32, #tpu.memory_space<vmem>>, vector<36x30xf32>
    %c0_1 = arith.constant 0 : index
    %c0_2 = arith.constant 0 : index
    %c0_3 = arith.constant 0 : index
    %1 = vector.load %arg2[%c0_1, %c0_2, %c0_3] : memref<1x30x512xf32, #tpu.memory_space<vmem>>, vector<1x30x512xf32>
    %2 = vector.shape_cast %1 : vector<1x30x512xf32> to vector<30x512xf32>
    %cst = arith.constant dense<0.000000e+00> : vector<36x512xf32>
    %3 = tpu.matmul %0, %2, %cst {dimension_numbers = #tpu.dot_dimension_numbers<[1], [0], [0], [1], [0, 0, 1, 1], [], []>} : vector<36x30xf32>, vector<30x512xf32>, vector<36x512xf32> -> vector<36x512xf32>
    %c0_4 = arith.constant 0 : index
    %c0_5 = arith.constant 0 : index
    %4 = vector.load %arg4[%c0_4, %c0_5] : memref<36x1xf32, #tpu.memory_space<vmem>>, vector<36x1xf32>
    %5 = vector.broadcast %4 : vector<36x1xf32> to vector<36x512xf32>
    %6 = arith.addf %3, %5 : vector<36x512xf32>
    %c0_6 = arith.constant 0 : index
    %c0_7 = arith.constant 0 : index
    %c0_8 = arith.constant 0 : index
    %7 = vector.load %arg5[%c0_6, %c0_7, %c0_8] : memref<1x36x512xf32, #tpu.memory_space<vmem>>, vector<1x36x512xf32>
    %8 = vector.shape_cast %7 : vector<1x36x512xf32> to vector<36x512xf32>
    %9 = vector.shape_cast %6 : vector<36x512xf32> to vector<1x36x512xf32>
    tpu.vector_store %arg5[%c0_6, %c0_7, %c0_8], %9 {strides = array<i32>} : memref<1x36x512xf32, #tpu.memory_space<vmem>>, vector<1x36x512xf32>,
    return
  }
  func.func @transform_0(%arg0: i32, %arg1: i32) -> (i32, i32, i32) {
    %c0_i32 = arith.constant 0 : i32
    %c0_i32_0 = arith.constant 0 : i32
    return %arg0, %c0_i32, %arg1 : i32, i32, i32
  }
  func.func @transform_1(%arg0: i32, %arg1: i32) -> (i32, i32) {
    %c0_i32 = arith.constant 0 : i32
    %c0_i32_0 = arith.constant 0 : i32
    %c0_i32_1 = arith.constant 0 : i32
    return %c0_i32, %c0_i32_0 : i32, i32
  }
  func.func @transform_2(%arg0: i32, %arg1: i32) -> (i32, i32) {
    %c0_i32 = arith.constant 0 : i32
    %c0_i32_0 = arith.constant 0 : i32
    %c0_i32_1 = arith.constant 0 : i32
    return %c0_i32, %c0_i32_0 : i32, i32
  }
  func.func @transform_3(%arg0: i32, %arg1: i32) -> (i32, i32, i32) {
    %c0_i32 = arith.constant 0 : i32
    %c0_i32_0 = arith.constant 0 : i32
    return %arg0, %c0_i32, %arg1 : i32, i32, i32
  }
}

</mosaic_0001>

<llo_original>
// kernel: tpu_custom_call.1
$region0: #{tpu_custom_call.1}
  #allocation0 [shape = 'u32[]', space=smem, size = 0x4, offset = 0x4, fixed_abs, tag = 'smem constant byte address 0x4 - core index']
  #allocation1 [shape = 'u32[144,128]{1,0:T(1,128)}', space=vmem, size = 0x12000, scoped, tag = 'internal scratch']
  %s0 = inlined_call_operand.vmem [shape: f32[2,30,512], index: 0, kind: input, shape index: {}]
  %s1 = inlined_call_operand.vmem [shape: f32[36,30], index: 1, kind: input, shape index: {}]
  %s2 = inlined_call_operand.vmem [shape: f32[36,1], index: 2, kind: input, shape index: {}]
  %s3 = inlined_call_operand.vmem [shape: f32[2,36,512], index: 3, kind: output, shape index: {}]
  %s4 = sld [smem:[#allocation0]]
  $region45: #{tpu_custom_call.1} parent=0
    _
  %s6 = ssub.s32 1, %s4
  %s7 = scalar_select 0, %s6, %s4
  loop: start=0, step=1, limit=4
  $region2: #{tpu_custom_call.1} parent=0 // loop_pre_header
    _
  $region3: #{tpu_custom_call.1} parent=0 // loop_header
    %s9 = sphi 0, %s13
    %p10 = scmp.ge.s32.totalorder %s9, 4
    %s16 = sphi 0, %s28
    %s17 = sphi 0, %s24
    %s18 = sphi 0, %s16
    %s19 = sphi 0, %s17
    %s20 = sphi 0, %s18
    %s21 = sphi 0, %s19
    %s33 = sphi 0, %s35
    %s36 = sphi 0, %s33
    %s37 = sphi 0, %s36
    %s53 = sphi 0, %s37
    %s57 = sphi 0, %s57
    %s59 = sphi 0, %s57
    %s60 = sphi 0, %s59
    %s74 = sphi 0, %s60
    %s78 = sphi 0, %s78
    %s80 = sphi 0, %s78
    %s81 = sphi 0, %s80
    %s95 = sphi 0, %s81
    %s103 = sphi 0, %s105
    %s106 = sphi 0, %s103
    %s107 = sphi 0, %s106
    %s123 = sphi 0, %s107
  $region4: #{tpu_custom_call.1} parent=0 // loop_header_branch
    %12 = sbr.rel (%p10) target = $region8
  $region5: #{tpu_custom_call.1} parent=0 // loop_body
    %s14 = ssub.s32 %s9, 1
    %s15 = ssub.s32 %s9, 2
    %s22 = sadd.s32 1, %s17
    %p23 = scmp.ge.s32.totalorder %s22, 1
    %s24 = scalar_select %p23, 0, %s22
    %s25 = sadd.s32 1, %s16
    %s26 = scalar_select %p23, %s25, %s16
    %p27 = scmp.ge.s32.totalorder %s26, 2
    %s28 = scalar_select %p27, 0, %s26
    %s29 = ssub.s32 %s16, %s28
    %s30 = ssub.s32 %s17, %s24
    %s31 = sor.u32 %s29, %s30
    %p32 = scmp.eq.s32.totalorder %s31, 0
    %s34 = sadd.s32 %s33, 1
    %s35 = scalar_select %p32, %s33, %s34
    %p38 = pneg %p32
    %p39 = scmp.eq.s32.totalorder %s9, 1
    %p40 = por %p38, %p39
    %p41 = scmp.ne.s32.totalorder %s33, %s36
    %p42 = scmp.eq.s32.totalorder %s9, 0
    %p43 = por %p41, %p42
    %p44 = scmp.ne.s32.totalorder %s33, %s36
    %p45 = scmp.eq.s32.totalorder %s14, 1
    %p46 = por %p44, %p45
    %p47 = scmp.ne.s32.totalorder %s36, %s37
    %p48 = scmp.eq.s32.totalorder %s14, 0
    %p49 = por %p47, %p48
    %p50 = scmp.ne.s32.totalorder %s36, %s37
    %p51 = scmp.eq.s32.totalorder %s15, 1
    %p52 = por %p50, %p51
    %p54 = scmp.ne.s32.totalorder %s37, %s53
    %p55 = scmp.eq.s32.totalorder %s15, 0
    %p56 = por %p54, %p55
    %s58 = sadd.s32 %s57, 1
    %p61 = scmp.eq.s32.totalorder %s9, 1
    %p62 = scmp.ne.s32.totalorder %s57, %s59
    %p63 = scmp.eq.s32.totalorder %s9, 0
    %p64 = por %p62, %p63
    %p65 = scmp.ne.s32.totalorder %s57, %s59
    %p66 = scmp.eq.s32.totalorder %s14, 1
    %p67 = por %p65, %p66
    %p68 = scmp.ne.s32.totalorder %s59, %s60
    %p69 = scmp.eq.s32.totalorder %s14, 0
    %p70 = por %p68, %p69
    %p71 = scmp.ne.s32.totalorder %s59, %s60
    %p72 = scmp.eq.s32.totalorder %s15, 1
    %p73 = por %p71, %p72
    %p75 = scmp.ne.s32.totalorder %s60, %s74
    %p76 = scmp.eq.s32.totalorder %s15, 0
    %p77 = por %p75, %p76
    %s79 = sadd.s32 %s78, 1
    %p82 = scmp.eq.s32.totalorder %s9, 1
    %p83 = scmp.ne.s32.totalorder %s78, %s80
    %p84 = scmp.eq.s32.totalorder %s9, 0
    %p85 = por %p83, %p84
    %p86 = scmp.ne.s32.totalorder %s78, %s80
    %p87 = scmp.eq.s32.totalorder %s14, 1
    %p88 = por %p86, %p87
    %p89 = scmp.ne.s32.totalorder %s80, %s81
    %p90 = scmp.eq.s32.totalorder %s14, 0
    %p91 = por %p89, %p90
    %p92 = scmp.ne.s32.totalorder %s80, %s81
    %p93 = scmp.eq.s32.totalorder %s15, 1
    %p94 = por %p92, %p93
    %p96 = scmp.ne.s32.totalorder %s81, %s95
    %p97 = scmp.eq.s32.totalorder %s15, 0
    %p98 = por %p96, %p97
    %s99 = ssub.s32 %s16, %s28
    %s100 = ssub.s32 %s17, %s24
    %s101 = sor.u32 %s99, %s100
    %p102 = scmp.eq.s32.totalorder %s101, 0
    %s104 = sadd.s32 %s103, 1
    %s105 = scalar_select %p102, %s103, %s104
    %p108 = pneg %p102
    %p109 = scmp.eq.s32.totalorder %s9, 1
    %p110 = por %p108, %p109
    %p111 = scmp.ne.s32.totalorder %s103, %s106
    %p112 = scmp.eq.s32.totalorder %s9, 0
    %p113 = por %p111, %p112
    %p114 = scmp.ne.s32.totalorder %s103, %s106
    %p115 = scmp.eq.s32.totalorder %s14, 1
    %p116 = por %p114, %p115
    %p117 = scmp.ne.s32.totalorder %s106, %s107
    %p118 = scmp.eq.s32.totalorder %s14, 0
    %p119 = por %p117, %p118
    %p120 = scmp.ne.s32.totalorder %s106, %s107
    %p121 = scmp.eq.s32.totalorder %s15, 1
    %p122 = por %p120, %p121
    %p124 = scmp.ne.s32.totalorder %s107, %s123
    %p125 = scmp.eq.s32.totalorder %s15, 0
    %p126 = por %p124, %p125
    %p127 = scmp.le.s32.totalorder 1, %s9
    %p128 = scmp.lt.s32.totalorder %s9, 3
    %p129 = pnand %p127, %p128
    %p130 = pneg %p129
    // Predicated region
    $region9: #{tpu_custom_call.1} parent=5 // pred_check
      _
    $region10: #{tpu_custom_call.1} parent=5 // pred_check_branch
      %132 = sbr.rel (%p129) target = $region12
    $region11: #{tpu_custom_call.1} parent=5 // pred_region
      %s133 = ssub.s32 %s9, 1
      // Predicated region
      $region13: #{tpu_custom_call.1} parent=11 // pred_check
        %p134 = pneg %p70
      $region14: #{tpu_custom_call.1} parent=11 // pred_check_branch
        %136 = sbr.rel (%p134) target = $region16
      $region15: #{tpu_custom_call.1} parent=11 // pred_region
        _
      $region16: #{tpu_custom_call.1} parent=11 // pred_fallthru
        _
      // Predicated region
      $region17: #{tpu_custom_call.1} parent=11 // pred_check
        %p137 = pneg %p91
      $region18: #{tpu_custom_call.1} parent=11 // pred_check_branch
        %139 = sbr.rel (%p137) target = $region20
      $region19: #{tpu_custom_call.1} parent=11 // pred_region
        _
      $region20: #{tpu_custom_call.1} parent=11 // pred_fallthru
        _
    $region12: #{tpu_custom_call.1} parent=5 // pred_fallthru
      _
    %p140 = scmp.lt.s32.totalorder %s9, 2
    // Predicated region
    $region21: #{tpu_custom_call.1} parent=5 // pred_check
      %p141 = pneg %p140
    $region22: #{tpu_custom_call.1} parent=5 // pred_check_branch
      %143 = sbr.rel (%p141) target = $region24
    $region23: #{tpu_custom_call.1} parent=5 // pred_region
      // Predicated region
      $region25: #{tpu_custom_call.1} parent=23 // pred_check
        %p144 = pneg %p43
      $region26: #{tpu_custom_call.1} parent=23 // pred_check_branch
        %146 = sbr.rel (%p144) target = $region28
      $region27: #{tpu_custom_call.1} parent=23 // pred_region
        %s147 = smul.u32 4, %s17
        %p148 = scmp.lt.s32.totalorder %s16, 1
        %s149 = scalar_select %p148, %s16, 1
        %p150 = scmp.lt.s32.totalorder %s147, 3
        %s151 = scalar_select %p150, %s147, 3
        %s152 = smul.addr %s149, 16
        %s153 = sadd.s32 %s151, %s152
        %s154 = smul.addr %s153, 8
        %s155 = scalar_lea.vmem %s0, %s154
        %s156 = smul.u32 4, %s17
      $region28: #{tpu_custom_call.1} parent=23 // pred_fallthru
        _
    $region24: #{tpu_custom_call.1} parent=5 // pred_fallthru
      _
    %p157 = scmp.le.s32.totalorder 1, %s9
    %p158 = scmp.lt.s32.totalorder %s9, 3
    %p159 = pnand %p157, %p158
    %p160 = pneg %p159
    // Predicated region
    $region29: #{tpu_custom_call.1} parent=5 // pred_check
      _
    $region30: #{tpu_custom_call.1} parent=5 // pred_check_branch
      %162 = sbr.rel (%p159) target = $region32
    $region31: #{tpu_custom_call.1} parent=5 // pred_region
      %s163 = ssub.s32 %s9, 1
      %s164 = smul.u32 4, %s19
      %p165 = scmp.lt.s32.totalorder %s18, 1
      %s166 = scalar_select %p165, %s18, 1
      %p167 = scmp.lt.s32.totalorder %s164, 3
      %s168 = scalar_select %p167, %s164, 3
      %s169 = smul.addr %s166, 16
      %s170 = sadd.s32 %s168, %s169
      %s171 = smul.addr %s170, 8
      %s172 = scalar_lea.vmem %s0, %s171
      %p173 = pneg %p49
      %p174 = pneg %p46
      %p175 = pneg %p70
      %p176 = pneg %p67
      %p177 = pneg %p91
      %p178 = pneg %p88
      %p179 = pneg %p119
      %p180 = pneg %p116
      %s181 = smul.u32 4, %s19
      %p182 = scmp.lt.s32.totalorder %s18, 1
      %s183 = scalar_select %p182, %s18, 1
      %p184 = scmp.lt.s32.totalorder %s181, 3
      %s185 = scalar_select %p184, %s181, 3
      %s186 = smul.addr %s183, 20
      %s187 = sadd.s32 %s185, %s186
      %s188 = smul.addr %s187, 8
      %s189 = scalar_lea.vmem %s3, %s188
      %s190 = smul.u32 4, %s19
      %p191 = scmp.lt.s32.totalorder %s18, 1
      %s192 = scalar_select %p191, %s18, 1
      %p193 = scmp.lt.s32.totalorder %s190, 3
      %s194 = scalar_select %p193, %s190, 3
      %s195 = smul.addr %s192, 16
      %s196 = sadd.s32 %s194, %s195
      %s197 = smul.addr %s196, 8
      %s198 = scalar_lea.vmem %s0, %s197
      %s199 = smul.u32 4, %s19
      %s200 = smul.u32 4, %s19
      %p201 = scmp.lt.s32.totalorder %s18, 1
      %s202 = scalar_select %p201, %s18, 1
      %p203 = scmp.lt.s32.totalorder %s200, 3
      %s204 = scalar_select %p203, %s200, 3
      %s205 = smul.addr %s202, 20
      %s206 = sadd.s32 %s204, %s205
      %s207 = smul.addr %s206, 8
      %s208 = scalar_lea.vmem %s3, %s207
      %s209 = smul.u32 4, %s19
      %v210 = vld [vmem:[%s1] sm:$0xff]
      %v211 = vld [vmem:[%s1 + $0x8] sm:$0xff]
      %v212 = vld [vmem:[%s1 + $0x10] sm:$0xff]
      %v213 = vld [vmem:[%s1 + $0x18] sm:$0xff]
      %v214 = vld [vmem:[%s1 + $0x20] sm:$0xf]
      %v215 = vld [vmem:[%s198] sm:$0xff]
      %v216 = vld [vmem:[%s198 + $0x8] sm:$0xff]
      %v217 = vld [vmem:[%s198 + $0x10] sm:$0xff]
      %v218 = vld [vmem:[%s198 + $0x18] sm:$0xff]
      %v219 = vld [vmem:[%s198 + $0x20] sm:$0xff]
      %v220 = vld [vmem:[%s198 + $0x28] sm:$0xff]
      %v221 = vld [vmem:[%s198 + $0x30] sm:$0xff]
      %v222 = vld [vmem:[%s198 + $0x38] sm:$0xff]
      %v223 = vld [vmem:[%s198 + $0x40] sm:$0xff]
      %v224 = vld [vmem:[%s198 + $0x48] sm:$0xff]
      %v225 = vld [vmem:[%s198 + $0x50] sm:$0xff]
      %v226 = vld [vmem:[%s198 + $0x58] sm:$0xff]
      %v227 = vld [vmem:[%s198 + $0x60] sm:$0x3f]
      %v228 = vld [vmem:[%s198 + $0x68] sm:$0x3f]
      %v229 = vld [vmem:[%s198 + $0x70] sm:$0x3f]
      %v230 = vld [vmem:[%s198 + $0x78] sm:$0x3f]
      %v231 = vld [vmem:[%s2] sm:$0xff]
      %v232 = vld [vmem:[%s2 + $0x8] sm:$0xff]
      %v233 = vld [vmem:[%s2 + $0x10] sm:$0xff]
      %v234 = vld [vmem:[%s2 + $0x18] sm:$0xff]
      %v235 = vld [vmem:[%s2 + $0x20] sm:$0xf]
      %237 = vset.pattern.permute.xlu0 0
      %238 = vperm.xlu0 %237, %v231
      %v239 = vpop.permute.xlu0 %238
      %242 = vset.pattern.permute.xlu0 0
      %243 = vperm.xlu0 %242, %v232
      %v244 = vpop.permute.xlu0 %243
      %247 = vset.pattern.permute.xlu0 0
      %248 = vperm.xlu0 %247, %v233
      %v249 = vpop.permute.xlu0 %248
      %252 = vset.pattern.permute.xlu0 0
      %253 = vperm.xlu0 %252, %v234
      %v254 = vpop.permute.xlu0 %253
      %257 = vset.pattern.permute.xlu0 0
      %258 = vperm.xlu0 %257, %v235
      %v259 = vpop.permute.xlu0 %258
      %vm261 = vcmask 244736
      %v263 = vsel %vm261, %v210, 0
      %v266 = vsel %vm261, %v211, 0
      %v269 = vsel %vm261, %v212, 0
      %v272 = vsel %vm261, %v213, 0
      %v275 = vsel %vm261, %v214, 0
      %vm277 = vcmask 1045504
      %v279 = vsel %vm277, %v227, 0
      %v282 = vsel %vm277, %v228, 0
      %v285 = vsel %vm277, %v229, 0
      %v288 = vsel %vm277, %v230, 0
      %290 = vmatprep.subr.mxu0 %v216
      %291 = vmatpush1.msra.mxu0 %v215
      %292 = vmatprep.subr.mxu0 %v220
      %293 = vmatpush1.msra.mxu0 %v219
      %294 = vmatprep.subr.mxu0 %v224
      %295 = vmatpush1.msra.mxu0 %v223
      %296 = vmatprep.subr.mxu0 %v282
      %297 = vmatpush1.msra.mxu0 %v279
      %298 = vmatprep.subr.mxu0 0.0
      %299 = vmatpush1.msra.mxu0 0.0
      %300 = vmatprep.subr.mxu0 0.0
      %301 = vmatpush1.msra.mxu0 0.0
      %302 = vmatprep.subr.mxu0 0.0
      %303 = vmatpush1.msra.mxu0 0.0
      %304 = vmatprep.subr.mxu0 0.0
      %305 = vmatpush1.msra.mxu0 0.0
      %306 = vmatprep.subr.mxu0 0.0
      %307 = vmatpush1.msra.mxu0 0.0
      %308 = vmatprep.subr.mxu0 0.0
      %309 = vmatpush1.msra.mxu0 0.0
      %310 = vmatprep.subr.mxu0 0.0
      %311 = vmatpush1.msra.mxu0 0.0
      %312 = vmatprep.subr.mxu0 0.0
      %313 = vmatpush1.msra.mxu0 0.0
      %314 = vmatprep.subr.mxu0 0.0
      %315 = vmatpush1.msra.mxu0 0.0
      %316 = vmatprep.subr.mxu0 0.0
      %317 = vmatpush1.msra.mxu0 0.0
      %318 = vmatprep.subr.mxu0 0.0
      %319 = vmatpush1.msra.mxu0 0.0
      %320 = vmatprep.subr.mxu0 0.0
      %321 = vmatpush1.msra.mxu0 0.0
      %322 = vmatprep.subr.mxu0 0.0
      %323 = vmatpush1.msra.mxu0 0.0
      %324 = vmatprep.subr.mxu0 0.0
      %325 = vmatpush1.msra.mxu0 0.0
      %326 = vmatprep.subr.mxu0 0.0
      %327 = vmatpush1.msra.mxu0 0.0
      %328 = vmatprep.subr.mxu0 0.0
      %329 = vmatpush1.msra.mxu0 0.0
      %330 = vmatprep.subr.mxu0 0.0
      %331 = vmatpush1.msra.mxu0 0.0
      %332 = vmatprep.subr.mxu0 0.0
      %333 = vmatpush1.msra.mxu0 0.0
      %334 = vmatprep.subr.mxu0 0.0
      %335 = vmatpush1.msra.mxu0 0.0
      %336 = vmatprep.subr.mxu0 0.0
      %337 = vmatpush1.msra.mxu0 0.0
      %338 = vmatprep.subr.mxu0 0.0
      %339 = vmatpush1.msra.mxu0 0.0
      %340 = vmatprep.subr.mxu0 0.0
      %341 = vmatpush1.msra.mxu0 0.0
      %342 = vmatprep.subr.mxu0 0.0
      %343 = vmatpush1.msra.mxu0 0.0
      %344 = vmatprep.subr.mxu0 0.0
      %345 = vmatpush1.msra.mxu0 0.0
      %346 = vmatprep.subr.mxu0 0.0
      %347 = vmatpush1.msra.mxu0 0.0
      %348 = vmatprep.subr.mxu0 0.0
      %349 = vmatpush1.msra.mxu0 0.0
      %350 = vmatprep.subr.mxu0 0.0
      %351 = vmatpush1.msra.mxu0 0.0
      %352 = vmatprep.subr.mxu0 0.0
      %353 = vmatpush1.msra.mxu0 0.0
      %354 = vmatprep.mubr.f32.mxu0 0.0
      %355 = vmatmul.mubr.f32.gmra.mrb[0].mxu0 %v263
      %v356 = vpop.f32.mrb[0].mxu0
      %v357 = vadd.f32 %v239, %v356
      %v358 = vpop.f32.mrb[0].mxu0
      %v359 = vadd.f32 %v239, %v358
      %360 = vmatprep.mubr.f32.mxu0 0.0
      %361 = vmatmul.mubr.f32.gmra.mrb[0].mxu0 %v266
      %v362 = vpop.f32.mrb[0].mxu0
      %v363 = vadd.f32 %v244, %v362
      %v364 = vpop.f32.mrb[0].mxu0
      %v365 = vadd.f32 %v244, %v364
      %366 = vmatprep.mubr.f32.mxu0 0.0
      %367 = vmatmul.mubr.f32.gmra.mrb[0].mxu0 %v269
      %v368 = vpop.f32.mrb[0].mxu0
      %v369 = vadd.f32 %v249, %v368
      %v370 = vpop.f32.mrb[0].mxu0
      %v371 = vadd.f32 %v249, %v370
      %372 = vmatprep.mubr.f32.mxu0 0.0
      %373 = vmatmul.mubr.f32.gmra.mrb[0].mxu0 %v272
      %v374 = vpop.f32.mrb[0].mxu0
      %v375 = vadd.f32 %v254, %v374
      %v376 = vpop.f32.mrb[0].mxu0
      %v377 = vadd.f32 %v254, %v376
      %378 = vmatprep.mubr.f32.mxu0 0.0
      %379 = vmatmul.mubr.f32.gmra.mrb[0].mxu0 %v275
      %v380 = vpop.f32.mrb[0].mxu0
      %v381 = vadd.f32 %v259, %v380
      %v382 = vpop.f32.mrb[0].mxu0
      %v383 = vadd.f32 %v259, %v382
      %384 = vdwg.mxu0
      %385 = vmatprep.subr.mxu0 %v218
      %386 = vmatpush1.msra.mxu0 %v217
      %387 = vmatprep.subr.mxu0 %v222
      %388 = vmatpush1.msra.mxu0 %v221
      %389 = vmatprep.subr.mxu0 %v226
      %390 = vmatpush1.msra.mxu0 %v225
      %391 = vmatprep.subr.mxu0 %v288
      %392 = vmatpush1.msra.mxu0 %v285
      %393 = vmatprep.subr.mxu0 0.0
      %394 = vmatpush1.msra.mxu0 0.0
      %395 = vmatprep.subr.mxu0 0.0
      %396 = vmatpush1.msra.mxu0 0.0
      %397 = vmatprep.subr.mxu0 0.0
      %398 = vmatpush1.msra.mxu0 0.0
      %399 = vmatprep.subr.mxu0 0.0
      %400 = vmatpush1.msra.mxu0 0.0
      %401 = vmatprep.subr.mxu0 0.0
      %402 = vmatpush1.msra.mxu0 0.0
      %403 = vmatprep.subr.mxu0 0.0
      %404 = vmatpush1.msra.mxu0 0.0
      %405 = vmatprep.subr.mxu0 0.0
      %406 = vmatpush1.msra.mxu0 0.0
      %407 = vmatprep.subr.mxu0 0.0
      %408 = vmatpush1.msra.mxu0 0.0
      %409 = vmatprep.subr.mxu0 0.0
      %410 = vmatpush1.msra.mxu0 0.0
      %411 = vmatprep.subr.mxu0 0.0
      %412 = vmatpush1.msra.mxu0 0.0
      %413 = vmatprep.subr.mxu0 0.0
      %414 = vmatpush1.msra.mxu0 0.0
      %415 = vmatprep.subr.mxu0 0.0
      %416 = vmatpush1.msra.mxu0 0.0
      %417 = vmatprep.subr.mxu0 0.0
      %418 = vmatpush1.msra.mxu0 0.0
      %419 = vmatprep.subr.mxu0 0.0
      %420 = vmatpush1.msra.mxu0 0.0
      %421 = vmatprep.subr.mxu0 0.0
      %422 = vmatpush1.msra.mxu0 0.0
      %423 = vmatprep.subr.mxu0 0.0
      %424 = vmatpush1.msra.mxu0 0.0
      %425 = vmatprep.subr.mxu0 0.0
      %426 = vmatpush1.msra.mxu0 0.0
      %427 = vmatprep.subr.mxu0 0.0
      %428 = vmatpush1.msra.mxu0 0.0
      %429 = vmatprep.subr.mxu0 0.0
      %430 = vmatpush1.msra.mxu0 0.0
      %431 = vmatprep.subr.mxu0 0.0
      %432 = vmatpush1.msra.mxu0 0.0
      %433 = vmatprep.subr.mxu0 0.0
      %434 = vmatpush1.msra.mxu0 0.0
      %435 = vmatprep.subr.mxu0 0.0
      %436 = vmatpush1.msra.mxu0 0.0
      %437 = vmatprep.subr.mxu0 0.0
      %438 = vmatpush1.msra.mxu0 0.0
      %439 = vmatprep.subr.mxu0 0.0
      %440 = vmatpush1.msra.mxu0 0.0
      %441 = vmatprep.subr.mxu0 0.0
      %442 = vmatpush1.msra.mxu0 0.0
      %443 = vmatprep.subr.mxu0 0.0
      %444 = vmatpush1.msra.mxu0 0.0
      %445 = vmatprep.subr.mxu0 0.0
      %446 = vmatpush1.msra.mxu0 0.0
      %447 = vmatprep.subr.mxu0 0.0
      %448 = vmatpush1.msra.mxu0 0.0
      %449 = vmatprep.mubr.f32.mxu0 0.0
      %450 = vmatmul.mubr.f32.gmra.mrb[0].mxu0 %v263
      %v451 = vpop.f32.mrb[0].mxu0
      %v452 = vadd.f32 %v239, %v451
      %v453 = vpop.f32.mrb[0].mxu0
      %v454 = vadd.f32 %v239, %v453
      %455 = vmatprep.mubr.f32.mxu0 0.0
      %456 = vmatmul.mubr.f32.gmra.mrb[0].mxu0 %v266
      %v457 = vpop.f32.mrb[0].mxu0
      %v458 = vadd.f32 %v244, %v457
      %v459 = vpop.f32.mrb[0].mxu0
      %v460 = vadd.f32 %v244, %v459
      %461 = vmatprep.mubr.f32.mxu0 0.0
      %462 = vmatmul.mubr.f32.gmra.mrb[0].mxu0 %v269
      %v463 = vpop.f32.mrb[0].mxu0
      %v464 = vadd.f32 %v249, %v463
      %v465 = vpop.f32.mrb[0].mxu0
      %v466 = vadd.f32 %v249, %v465
      %467 = vmatprep.mubr.f32.mxu0 0.0
      %468 = vmatmul.mubr.f32.gmra.mrb[0].mxu0 %v272
      %v469 = vpop.f32.mrb[0].mxu0
      %v470 = vadd.f32 %v254, %v469
      %v471 = vpop.f32.mrb[0].mxu0
      %v472 = vadd.f32 %v254, %v471
      %473 = vmatprep.mubr.f32.mxu0 0.0
      %474 = vmatmul.mubr.f32.gmra.mrb[0].mxu0 %v275
      %v475 = vpop.f32.mrb[0].mxu0
      %v476 = vadd.f32 %v259, %v475
      %v477 = vpop.f32.mrb[0].mxu0
      %v478 = vadd.f32 %v259, %v477
      %479 = vdwg.mxu0
      %480 = vst [vmem:[%s208] sm:$0xff] %v357
      %481 = vst [vmem:[%s208 + $0x8] sm:$0xff] %v359
      %482 = vst [vmem:[%s208 + $0x10] sm:$0xff] %v452
      %483 = vst [vmem:[%s208 + $0x18] sm:$0xff] %v454
      %484 = vst [vmem:[%s208 + $0x20] sm:$0xff] %v363
      %485 = vst [vmem:[%s208 + $0x28] sm:$0xff] %v365
      %486 = vst [vmem:[%s208 + $0x30] sm:$0xff] %v458
      %487 = vst [vmem:[%s208 + $0x38] sm:$0xff] %v460
      %488 = vst [vmem:[%s208 + $0x40] sm:$0xff] %v369
      %489 = vst [vmem:[%s208 + $0x48] sm:$0xff] %v371
      %490 = vst [vmem:[%s208 + $0x50] sm:$0xff] %v464
      %491 = vst [vmem:[%s208 + $0x58] sm:$0xff] %v466
      %492 = vst [vmem:[%s208 + $0x60] sm:$0xff] %v375
      %493 = vst [vmem:[%s208 + $0x68] sm:$0xff] %v377
      %494 = vst [vmem:[%s208 + $0x70] sm:$0xff] %v470
      %495 = vst [vmem:[%s208 + $0x78] sm:$0xff] %v472
      %496 = vst [vmem:[%s208 + $0x80] sm:$0xf] %v381
      %497 = vst [vmem:[%s208 + $0x88] sm:$0xf] %v383
      %498 = vst [vmem:[%s208 + $0x90] sm:$0xf] %v476
      %499 = vst [vmem:[%s208 + $0x98] sm:$0xf] %v478
      %s500 = smul.u32 4, %s19
      %p501 = scmp.lt.s32.totalorder %s18, 1
      %s502 = scalar_select %p501, %s18, 1
      %p503 = scmp.lt.s32.totalorder %s500, 3
      %s504 = scalar_select %p503, %s500, 3
      %s505 = smul.addr %s502, 20
      %s506 = sadd.s32 %s504, %s505
      %s507 = smul.addr %s506, 8
      %s508 = scalar_lea.vmem %s3, %s507
      // Predicated region
      $region33: #{tpu_custom_call.1} parent=31 // pred_check
        %p509 = pneg %p116
      $region34: #{tpu_custom_call.1} parent=31 // pred_check_branch
        %511 = sbr.rel (%p509) target = $region36
      $region35: #{tpu_custom_call.1} parent=31 // pred_region
        %s512 = smul.u32 4, %s19
      $region36: #{tpu_custom_call.1} parent=31 // pred_fallthru
        _
    $region32: #{tpu_custom_call.1} parent=5 // pred_fallthru
      _
    %p513 = scmp.le.s32.totalorder 2, %s9
    // Predicated region
    $region37: #{tpu_custom_call.1} parent=5 // pred_check
      %p514 = pneg %p513
    $region38: #{tpu_custom_call.1} parent=5 // pred_check_branch
      %516 = sbr.rel (%p514) target = $region40
    $region39: #{tpu_custom_call.1} parent=5 // pred_region
      %s517 = ssub.s32 %s9, 2
      // Predicated region
      $region41: #{tpu_custom_call.1} parent=39 // pred_check
        %p518 = pneg %p122
      $region42: #{tpu_custom_call.1} parent=39 // pred_check_branch
        %520 = sbr.rel (%p518) target = $region44
      $region43: #{tpu_custom_call.1} parent=39 // pred_region
        %s521 = smul.u32 4, %s21
        %p522 = scmp.lt.s32.totalorder %s20, 1
        %s523 = scalar_select %p522, %s20, 1
        %p524 = scmp.lt.s32.totalorder %s521, 3
        %s525 = scalar_select %p524, %s521, 3
        %s526 = smul.addr %s523, 20
        %s527 = sadd.s32 %s525, %s526
        %s528 = smul.addr %s527, 8
        %s529 = scalar_lea.vmem %s3, %s528
      $region44: #{tpu_custom_call.1} parent=39 // pred_fallthru
        _
    $region40: #{tpu_custom_call.1} parent=5 // pred_fallthru
      _
  $region6: #{tpu_custom_call.1} parent=0 // loop_footer
    %s13 = sadd.s32 1, %s9
  $region7: #{tpu_custom_call.1} parent=0 // loop_footer_branch
    %8 = sbr.rel target = $region3
  $region8: #{tpu_custom_call.1} parent=0 // loop_exit
    _

</llo_original>
